<compile_context>
chip_gen: v6e
topology: v6e:2x2x1
jax: 0.10.0
libtpu: 0.0.40
codegen_flags: <defaults>
</compile_context>

<pallas_src>
import bisect
import functools
import math

import jax
import jax.numpy as jnp
import numpy as np
from jax.experimental import pallas as pl
from jax.experimental.pallas import tpu as pltpu


def _dist_encoder_kernel(dist_ref, rep_ref, tab_ref, embed_ref, out_ref, *,
                         fold, s_first, s_last, inv_bottom):
    """One grid step: a tile of output rows (each covering P distances)."""
    v_rows = dist_ref[...].astype(jnp.float32)                    # (tile_r, P)

    if fold:
        # Replicate each distance across its S-lane group:
        # v[r, p*S + s] = v_rows[r, p]   (tiny MXU matmul, keeps VPU/XLU free)
        v = jnp.dot(v_rows, rep_ref[...], preferred_element_type=jnp.float32)
    else:
        v = v_rows                                                 # (tile_r, 1) broadcasts

    a_s    = tab_ref[0:1, :]   # s[j-1]            (placeholder at group-lane 0)
    a_g    = tab_ref[1:2, :]   # 1/(s[j]-s[j-1])   (0 at group-lane 0)
    a_one  = tab_ref[2:3, :]   # 1 at group-lane 0  (doubles as the E[0] mask)
    b_s    = tab_ref[3:4, :]   # s[j]
    b_g    = tab_ref[4:5, :]   # 1/(s[j+1]-s[j])   (0 at group-lane S-1)
    m_last = tab_ref[5:6, :]   # 1 at group-lane S-1 (the E[S-1] mask)

    # Hat-basis interpolation weights (pure VPU, no reductions, no gathers).
    a = jnp.clip((v - a_s) * a_g + a_one, 0.0, 1.0)
    b = jnp.clip((v - b_s) * b_g, 0.0, 1.0)
    w = a - b                                                      # (tile_r, P*S)

    # v < s[0]: PyTorch negative-indexing branch -> weights on E[0] and E[S-1].
    ld_b = (v - s_last) * inv_bottom
    w = jnp.where(v < s_first, a_one * ld_b + m_last * (1.0 - ld_b), w)

    out = jnp.dot(w, embed_ref[...], preferred_element_type=jnp.float32)
    out_ref[...] = out.astype(out_ref.dtype)


@functools.lru_cache(maxsize=32)
def _static_tables(slots_key, fold_p):
    """Host-side (numpy) tables depending only on the static slot list and P."""
    slots = np.asarray(slots_key, dtype=np.float64)                # sorted
    S = slots.shape[0]
    P = fold_p
    L = P * S

    gaps = np.diff(slots)                                          # (S-1,)
    safe = np.where(gaps == 0.0, 1.0, gaps)
    inv_gaps = np.where(gaps == 0.0, 0.0, 1.0 / safe)              # degenerate guard

    a_s = np.concatenate([slots[:1], slots[:-1]])
    a_g = np.concatenate([[0.0], inv_gaps])
    a_one = np.zeros(S); a_one[0] = 1.0
    b_s = slots
    b_g = np.concatenate([inv_gaps, [0.0]])
    m_last = np.zeros(S); m_last[-1] = 1.0

    tab = np.zeros((8, L), np.float32)
    for row, vals in enumerate((a_s, a_g, a_one, b_s, b_g, m_last)):
        tab[row] = np.tile(vals, P)

    rep = np.zeros((P, L), np.float32)
    for p in range(P):
        rep[p, p * S:(p + 1) * S] = 1.0

    s_first = float(slots[0])
    s_last = float(slots[-1])
    denom = float(slots[0] - slots[-1])
    inv_bottom = (1.0 / denom) if denom != 0.0 else 0.0
    return tab, rep, s_first, s_last, inv_bottom


def distance_encoder_hstlstm(dist, spatial_slots, embed_weight, *,
                             tile_rows=256, out_dtype=jnp.float32):
    """dist: (B, T); embed_weight: (S, D); spatial_slots: static host list.
    Returns (B, T, D)."""
    B, T = dist.shape
    S, D = embed_weight.shape
    N = B * T

    slots_key = tuple(float(s) for s in sorted(np.asarray(spatial_slots).tolist()))
    assert len(slots_key) == S

    # Fold P distance rows into one lane-dense 128-wide output row when possible;
    # P must divide both 128/D and N, and keep at least 8 output rows for clean
    # sublane tiling of the matmul operands.
    if D <= 128 and 128 % D == 0:
        P = math.gcd(128 // D, N)
        while P > 1 and N // P < 8:
            P //= 2
    else:
        P = 1
    R = N // P
    Dout = P * D
    L = P * S
    fold = P > 1

    tab_np, rep_np, s_first, s_last, inv_bottom = _static_tables(slots_key, P)
    tab = jnp.asarray(tab_np)
    rep = jnp.asarray(rep_np)

    E = embed_weight if embed_weight.dtype == jnp.float32 else embed_weight.astype(jnp.float32)
    # Block-diagonal embedding: E_f[p*S + s, p*D + d] = E[s, d]   (tiny, (P*S, P*D)).
    E_f = jnp.kron(jnp.eye(P, dtype=jnp.float32), E) if fold else E

    dist_rows = dist.reshape(R, P)
    if dist_rows.dtype != jnp.float32:
        dist_rows = dist_rows.astype(jnp.float32)

    # Tile over output rows; ensure >=2 grid steps when there is enough work so
    # the v7x megacore can split the "parallel" axis across both TensorCores.
    if R >= 16:
        half = (R + 1) // 2
        tile_r = min(int(tile_rows), ((half + 7) // 8) * 8)
        tile_r = max(8, (tile_r // 8) * 8)
    else:
        tile_r = R

    kernel = functools.partial(_dist_encoder_kernel, fold=fold, s_first=s_first,
                               s_last=s_last, inv_bottom=inv_bottom)

    out = pl.pallas_call(
        kernel,
        out_shape=jax.ShapeDtypeStruct((R, Dout), out_dtype),
        grid=(pl.cdiv(R, tile_r),),
        in_specs=[
            pl.BlockSpec((tile_r, P), lambda i: (i, 0)),   # folded distance rows
            pl.BlockSpec((P, L), lambda i: (0, 0)),        # lane-replication matrix (resident)
            pl.BlockSpec((8, L), lambda i: (0, 0)),        # static slot/gap/mask table (resident)
            pl.BlockSpec((L, Dout), lambda i: (0, 0)),     # (block-diagonal) embedding (resident)
        ],
        out_specs=pl.BlockSpec((tile_r, Dout), lambda i: (i, 0)),
        compiler_params=pltpu.CompilerParams(dimension_semantics=("parallel",)),
    )(dist_rows, rep, tab, E_f)

    # Free row-major reinterpretation: (R, P*D) == flat (N, D) -> (B, T, D).
    return out.reshape(B, T, D)


def _reference(dist_np, slots_list, W_np):
    """Numpy/bisect replica of the PyTorch forward (incl. negative indexing)."""
    slots = sorted(float(s) for s in slots_list)
    B, T = dist_np.shape
    D = W_np.shape[1]
    out = np.zeros((B, T, D), np.float32)
    for b in range(B):
        for t in range(T):
            v = float(dist_np[b, t])
            hbd = bisect.bisect(slots, v)
            if hbd == len(slots):
                ldv, hdv, l, h = 1.0, 0.0, len(slots) - 1, len(slots) - 1
            else:
                lbd = hbd - 1
                lv, hv = slots[lbd], slots[hbd]
                tot = hv - lv
                ldv, hdv, l, h = (v - lv) / tot, (hv - v) / tot, lbd, hbd
            out[b, t] = hdv * W_np[l] + ldv * W_np[h]
    return out


if __name__ == "__main__":
    spatial_slots = [0.0, 0.5, 1.0, 2.0, 4.0, 8.0, 16.0, 32.0, 64.0, 128.0]
    S = len(spatial_slots)
    embedding_dim = 32

    key = jax.random.PRNGKey(0)
    k_dist, k_embed, k_dist2, k_dist3 = jax.random.split(key, 4)
    embed_weight = jax.random.normal(k_embed, (S, embedding_dim), dtype=jnp.float32)
    W_np = np.asarray(embed_weight)

    # Primary small case (batch=2, step=8): distances in [-5, 150] exercise the
    # below-first-slot (negative-index) branch, in-range interpolation, and the
    # >= last-slot branch.  Folded, single-grid-step path.
    B, T = 2, 8
    dist = jax.random.uniform(k_dist, (B, T), minval=-5.0, maxval=150.0, dtype=jnp.float32)
    out = jax.block_until_ready(distance_encoder_hstlstm(dist, spatial_slots, embed_weight))
    assert out.shape == (B, T, embedding_dim)
    ref = _reference(np.asarray(dist), spatial_slots, W_np)
    assert np.allclose(np.asarray(out), ref, atol=1e-4, rtol=1e-4), "primary case mismatch"

    # Folded, multi-grid-step path with a ragged last block (R=40, tile 24).
    B2, T2 = 8, 20
    dist2 = jax.random.uniform(k_dist2, (B2, T2), minval=-5.0, maxval=150.0, dtype=jnp.float32)
    out2 = jax.block_until_ready(distance_encoder_hstlstm(dist2, spatial_slots, embed_weight))
    ref2 = _reference(np.asarray(dist2), spatial_slots, W_np)
    assert np.allclose(np.asarray(out2), ref2, atol=1e-4, rtol=1e-4), "ragged/multi-step mismatch"

    # N not divisible by 128/D -> P=1 fallback (unpadded full-last-dim output).
    B3, T3 = 3, 7
    dist3 = jax.random.uniform(k_dist3, (B3, T3), minval=-5.0, maxval=150.0, dtype=jnp.float32)
    out3 = jax.block_until_ready(distance_encoder_hstlstm(dist3, spatial_slots, embed_weight))
    ref3 = _reference(np.asarray(dist3), spatial_slots, W_np)
    assert np.allclose(np.asarray(out3), ref3, atol=1e-4, rtol=1e-4), "fallback (P=1) mismatch"

    print("KERNEL_OK")
</pallas_src>

<mosaic_0001>
module attributes {stable_mosaic.version = 11 : i64} {
  func.func @_dist_encoder_kernel(%arg0: i32, %arg1: memref<8x2xf32, #tpu.memory_space<vmem>>, %arg2: memref<2x20xf32, #tpu.memory_space<vmem>>, %arg3: memref<8x20xf32, #tpu.memory_space<vmem>>, %arg4: memref<20x64xf32, #tpu.memory_space<vmem>>, %arg5: memref<8x64xf32, #tpu.memory_space<vmem>>) attributes {dimension_semantics = [#tpu.dimension_semantics<parallel>], iteration_bounds = array<i64: 1>, scalar_prefetch = 0 : i64, scratch_operands = 0 : i64, tpu.core_type = #tpu.core_type<tc>, window_params = [{transform_indices = @transform_0, window_bounds = array<i64: 8, 2>}, {pipeline_mode = #tpu.pipeline_mode<synchronous>, transform_indices = @transform_1, window_bounds = array<i64: 2, 20>}, {pipeline_mode = #tpu.pipeline_mode<synchronous>, transform_indices = @transform_2, window_bounds = array<i64: 8, 20>}, {pipeline_mode = #tpu.pipeline_mode<synchronous>, transform_indices = @transform_3, window_bounds = array<i64: 20, 64>}, {transform_indices = @transform_4, window_bounds = array<i64: 8, 64>}]} {
    %c0 = arith.constant 0 : index
    %c0_0 = arith.constant 0 : index
    %0 = vector.load %arg1[%c0, %c0_0] : memref<8x2xf32, #tpu.memory_space<vmem>>, vector<8x2xf32>
    %c0_1 = arith.constant 0 : index
    %c0_2 = arith.constant 0 : index
    %1 = vector.load %arg2[%c0_1, %c0_2] : memref<2x20xf32, #tpu.memory_space<vmem>>, vector<2x20xf32>
    %cst = arith.constant dense<0.000000e+00> : vector<8x20xf32>
    %2 = tpu.matmul %0, %1, %cst {dimension_numbers = #tpu.dot_dimension_numbers<[1], [0], [0], [1], [0, 0, 1, 1], [], []>} : vector<8x2xf32>, vector<2x20xf32>, vector<8x20xf32> -> vector<8x20xf32>
    %c0_3 = arith.constant 0 : index
    %c0_4 = arith.constant 0 : index
    %3 = vector.load %arg3[%c0_3, %c0_4] : memref<8x20xf32, #tpu.memory_space<vmem>>, vector<1x20xf32>
    %c1 = arith.constant 1 : index
    %c0_5 = arith.constant 0 : index
    %4 = vector.load %arg3[%c1, %c0_5] : memref<8x20xf32, #tpu.memory_space<vmem>>, vector<1x20xf32>
    %c2 = arith.constant 2 : index
    %c0_6 = arith.constant 0 : index
    %5 = vector.load %arg3[%c2, %c0_6] : memref<8x20xf32, #tpu.memory_space<vmem>>, vector<1x20xf32>
    %c3 = arith.constant 3 : index
    %c0_7 = arith.constant 0 : index
    %6 = vector.load %arg3[%c3, %c0_7] : memref<8x20xf32, #tpu.memory_space<vmem>>, vector<1x20xf32>
    %c4 = arith.constant 4 : index
    %c0_8 = arith.constant 0 : index
    %7 = vector.load %arg3[%c4, %c0_8] : memref<8x20xf32, #tpu.memory_space<vmem>>, vector<1x20xf32>
    %c5 = arith.constant 5 : index
    %c0_9 = arith.constant 0 : index
    %8 = vector.load %arg3[%c5, %c0_9] : memref<8x20xf32, #tpu.memory_space<vmem>>, vector<1x20xf32>
    %9 = vector.broadcast %3 : vector<1x20xf32> to vector<8x20xf32>
    %10 = arith.subf %2, %9 : vector<8x20xf32>
    %11 = vector.broadcast %4 : vector<1x20xf32> to vector<8x20xf32>
    %12 = arith.mulf %10, %11 : vector<8x20xf32>
    %13 = vector.broadcast %5 : vector<1x20xf32> to vector<8x20xf32>
    %14 = arith.addf %12, %13 : vector<8x20xf32>
    %cst_10 = arith.constant 0.000000e+00 : f32
    %cst_11 = arith.constant 1.000000e+00 : f32
    %15 = vector.broadcast %cst_10 : f32 to vector<8x20xf32>
    %16 = arith.maximumf %15, %14 : vector<8x20xf32>
    %17 = vector.broadcast %cst_11 : f32 to vector<8x20xf32>
    %18 = arith.minimumf %17, %16 : vector<8x20xf32>
    %19 = vector.broadcast %6 : vector<1x20xf32> to vector<8x20xf32>
    %20 = arith.subf %2, %19 : vector<8x20xf32>
    %21 = vector.broadcast %7 : vector<1x20xf32> to vector<8x20xf32>
    %22 = arith.mulf %20, %21 : vector<8x20xf32>
    %cst_12 = arith.constant 0.000000e+00 : f32
    %cst_13 = arith.constant 1.000000e+00 : f32
    %23 = vector.broadcast %cst_12 : f32 to vector<8x20xf32>
    %24 = arith.maximumf %23, %22 : vector<8x20xf32>
    %25 = vector.broadcast %cst_13 : f32 to vector<8x20xf32>
    %26 = arith.minimumf %25, %24 : vector<8x20xf32>
    %27 = arith.subf %18, %26 : vector<8x20xf32>
    %cst_14 = arith.constant 1.280000e+02 : f32
    %28 = vector.broadcast %cst_14 : f32 to vector<8x20xf32>
    %29 = arith.subf %2, %28 : vector<8x20xf32>
    %cst_15 = arith.constant -7.812500e-03 : f32
    %30 = vector.broadcast %cst_15 : f32 to vector<8x20xf32>
    %31 = arith.mulf %29, %30 : vector<8x20xf32>
    %cst_16 = arith.constant 0.000000e+00 : f32
    %32 = vector.broadcast %cst_16 : f32 to vector<8x20xf32>
    %33 = arith.cmpf olt, %2, %32 : vector<8x20xf32>
    %34 = vector.broadcast %5 : vector<1x20xf32> to vector<8x20xf32>
    %35 = arith.mulf %34, %31 : vector<8x20xf32>
    %cst_17 = arith.constant 1.000000e+00 : f32
    %36 = vector.broadcast %cst_17 : f32 to vector<8x20xf32>
    %37 = arith.subf %36, %31 : vector<8x20xf32>
    %38 = vector.broadcast %8 : vector<1x20xf32> to vector<8x20xf32>
    %39 = arith.mulf %38, %37 : vector<8x20xf32>
    %40 = arith.addf %35, %39 : vector<8x20xf32>
    %41 = arith.select %33, %40, %27 : vector<8x20xi1>, vector<8x20xf32>
    %c0_18 = arith.constant 0 : index
    %c0_19 = arith.constant 0 : index
    %42 = vector.load %arg4[%c0_18, %c0_19] : memref<20x64xf32, #tpu.memory_space<vmem>>, vector<20x64xf32>
    %cst_20 = arith.constant dense<0.000000e+00> : vector<8x64xf32>
    %43 = tpu.matmul %41, %42, %cst_20 {dimension_numbers = #tpu.dot_dimension_numbers<[1], [0], [0], [1], [0, 0, 1, 1], [], []>} : vector<8x20xf32>, vector<20x64xf32>, vector<8x64xf32> -> vector<8x64xf32>
    %c0_21 = arith.constant 0 : index
    %c0_22 = arith.constant 0 : index
    %44 = vector.load %arg5[%c0_21, %c0_22] : memref<8x64xf32, #tpu.memory_space<vmem>>, vector<8x64xf32>
    tpu.vector_store %arg5[%c0_21, %c0_22], %43 {strides = array<i32>} : memref<8x64xf32, #tpu.memory_space<vmem>>, vector<8x64xf32>,
    return
  }
  func.func @transform_0(%arg0: i32) -> (i32, i32) {
    %c0_i32 = arith.constant 0 : i32
    %c0_i32_0 = arith.constant 0 : i32
    return %arg0, %c0_i32 : i32, i32
  }
  func.func @transform_1(%arg0: i32) -> (i32, i32) {
    %c0_i32 = arith.constant 0 : i32
    %c0_i32_0 = arith.constant 0 : i32
    %c0_i32_1 = arith.constant 0 : i32
    return %c0_i32, %c0_i32_0 : i32, i32
  }
  func.func @transform_2(%arg0: i32) -> (i32, i32) {
    %c0_i32 = arith.constant 0 : i32
    %c0_i32_0 = arith.constant 0 : i32
    %c0_i32_1 = arith.constant 0 : i32
    return %c0_i32, %c0_i32_0 : i32, i32
  }
  func.func @transform_3(%arg0: i32) -> (i32, i32) {
    %c0_i32 = arith.constant 0 : i32
    %c0_i32_0 = arith.constant 0 : i32
    %c0_i32_1 = arith.constant 0 : i32
    return %c0_i32, %c0_i32_0 : i32, i32
  }
  func.func @transform_4(%arg0: i32) -> (i32, i32) {
    %c0_i32 = arith.constant 0 : i32
    %c0_i32_0 = arith.constant 0 : i32
    return %arg0, %c0_i32 : i32, i32
  }
}

</mosaic_0001>

<llo_original>
// kernel: tpu_custom_call.1
$region0: #{tpu_custom_call.1}
  #allocation0 [shape = 'u32[]', space=smem, size = 0x4, offset = 0x4, fixed_abs, tag = 'smem constant byte address 0x4 - core index']
  #allocation1 [shape = 'u32[144,128]{1,0:T(1,128)}', space=vmem, size = 0x12000, scoped, tag = 'internal scratch']
  %s0 = inlined_call_operand.vmem [shape: f32[8,2], index: 0, kind: input, shape index: {}]
  %s1 = inlined_call_operand.vmem [shape: f32[2,20], index: 1, kind: input, shape index: {}]
  %s2 = inlined_call_operand.vmem [shape: f32[8,20], index: 2, kind: input, shape index: {}]
  %s3 = inlined_call_operand.hbm [shape: f32[20,64], index: 3, kind: input, shape index: {}]
  %s4 = inlined_call_operand.hbm [shape: f32[8,64], index: 4, kind: output, shape index: {}]
  %s5 = sld [smem:[#allocation0]]
  $region30: #{tpu_custom_call.1} parent=0
    _
  %s7 = ssub.s32 1, %s5
  %s8 = scalar_select 0, %s7, %s5
  $region1: #{tpu_custom_call.1} parent=0
    #allocation2 [shape = 'u8[12288]{0}', space=vmem, size = 0x3000, scoped, tag = 'input window, operand 3, single buffered']
    #allocation3 [shape = 's32[1]{0}', space=sflag, size = 0x4, scoped, tag = 'scoped memory for tpu_custom_call.1']
    #allocation4 [shape = 's32[1]{0}', space=sflag, size = 0x4, scoped, tag = 'scoped memory for tpu_custom_call.1']
    #allocation5 [shape = 'u8[4096]{0}', space=vmem, size = 0x1000, scoped, tag = 'output window, operand 0, single buffered']
    %9 = vsyncpa [#allocation3], 0
    %10 = vsyncpa [#allocation4], 0
    // Predicated region
    $region2: #{tpu_custom_call.1} parent=1 // pred_check
      _
    $region3: #{tpu_custom_call.1} parent=1 // pred_check_branch
      %12 = sbr.rel (0) target = $region5
    $region4: #{tpu_custom_call.1} parent=1 // pred_region
      _
    $region5: #{tpu_custom_call.1} parent=1 // pred_fallthru
      _
    // Predicated region
    $region6: #{tpu_custom_call.1} parent=1 // pred_check
      _
    $region7: #{tpu_custom_call.1} parent=1 // pred_check_branch
      %14 = sbr.rel (0) target = $region9
    $region8: #{tpu_custom_call.1} parent=1 // pred_region
      _
    $region9: #{tpu_custom_call.1} parent=1 // pred_fallthru
      _
    // Predicated region
    $region10: #{tpu_custom_call.1} parent=1 // pred_check
      _
    $region11: #{tpu_custom_call.1} parent=1 // pred_check_branch
      %16 = sbr.rel (0) target = $region13
    $region12: #{tpu_custom_call.1} parent=1 // pred_region
      _
    $region13: #{tpu_custom_call.1} parent=1 // pred_fallthru
      _
    // Predicated region
    $region14: #{tpu_custom_call.1} parent=1 // pred_check
      _
    $region15: #{tpu_custom_call.1} parent=1 // pred_check_branch
      %18 = sbr.rel (0) target = $region17
    $region16: #{tpu_custom_call.1} parent=1 // pred_region
      %s20 = ssub.s32 384, 384
      %21 = vsyncadd [#allocation3], %s20
      %s22 = sshll.u32 [#allocation2], 4
      %s23 = int_to_ptr.vmem [resolvable:$true] %s22
      %28 = dma.hbm_to_vmem [thread:$0]  %s3, 384, %s23, [#allocation3], 128, 128, 8
    $region17: #{tpu_custom_call.1} parent=1 // pred_fallthru
      _
    // Predicated region
    $region18: #{tpu_custom_call.1} parent=1 // pred_check
      _
    $region19: #{tpu_custom_call.1} parent=1 // pred_check_branch
      %30 = sbr.rel (0) target = $region21
    $region20: #{tpu_custom_call.1} parent=1 // pred_region
      %31 = dma.done [#allocation3], 384
    $region21: #{tpu_custom_call.1} parent=1 // pred_fallthru
      _
    %v32 = vld [vmem:[%s0] sm:$0xff]
    %v33 = vld [vmem:[%s1] sm:$0x3]
    %vm34 = vcmask 15360
    %v36 = vsel %vm34, %v32, 0
    %vm38 = vcmask 1041408
    %v40 = vsel %vm38, %v33, 0
    %42 = vmatprep.subr.mxu0 0.0
    %43 = vmatpush1.msra.mxu0 0.0
    %44 = vmatprep.subr.mxu0 0.0
    %45 = vmatpush1.msra.mxu0 0.0
    %46 = vmatprep.subr.mxu0 0.0
    %47 = vmatpush1.msra.mxu0 0.0
    %48 = vmatprep.subr.mxu0 0.0
    %49 = vmatpush1.msra.mxu0 0.0
    %50 = vmatprep.subr.mxu0 0.0
    %51 = vmatpush1.msra.mxu0 0.0
    %52 = vmatprep.subr.mxu0 0.0
    %53 = vmatpush1.msra.mxu0 0.0
    %54 = vmatprep.subr.mxu0 0.0
    %55 = vmatpush1.msra.mxu0 0.0
    %56 = vmatprep.subr.mxu0 0.0
    %57 = vmatpush1.msra.mxu0 0.0
    %58 = vmatprep.subr.mxu0 0.0
    %59 = vmatpush1.msra.mxu0 0.0
    %60 = vmatprep.subr.mxu0 0.0
    %61 = vmatpush1.msra.mxu0 0.0
    %62 = vmatprep.subr.mxu0 0.0
    %63 = vmatpush1.msra.mxu0 0.0
    %64 = vmatprep.subr.mxu0 0.0
    %65 = vmatpush1.msra.mxu0 0.0
    %66 = vmatprep.subr.mxu0 0.0
    %67 = vmatpush1.msra.mxu0 0.0
    %68 = vmatprep.subr.mxu0 0.0
    %69 = vmatpush1.msra.mxu0 0.0
    %70 = vmatprep.subr.mxu0 0.0
    %71 = vmatpush1.msra.mxu0 0.0
    %72 = vmatprep.subr.mxu0 0.0
    %73 = vmatpush1.msra.mxu0 %v40
    %74 = vmatprep.subr.mxu0 0.0
    %75 = vmatpush2.msra.mxu0 0.0
    %76 = vmatprep.subr.mxu0 0.0
    %77 = vmatpush2.msra.mxu0 0.0
    %78 = vmatprep.subr.mxu0 0.0
    %79 = vmatpush2.msra.mxu0 0.0
    %80 = vmatprep.subr.mxu0 0.0
    %81 = vmatpush2.msra.mxu0 0.0
    %82 = vmatprep.subr.mxu0 0.0
    %83 = vmatpush2.msra.mxu0 0.0
    %84 = vmatprep.subr.mxu0 0.0
    %85 = vmatpush2.msra.mxu0 0.0
    %86 = vmatprep.subr.mxu0 0.0
    %87 = vmatpush2.msra.mxu0 0.0
    %88 = vmatprep.subr.mxu0 0.0
    %89 = vmatpush2.msra.mxu0 0.0
    %90 = vmatprep.subr.mxu0 0.0
    %91 = vmatpush2.msra.mxu0 0.0
    %92 = vmatprep.subr.mxu0 0.0
    %93 = vmatpush2.msra.mxu0 0.0
    %94 = vmatprep.subr.mxu0 0.0
    %95 = vmatpush2.msra.mxu0 0.0
    %96 = vmatprep.subr.mxu0 0.0
    %97 = vmatpush2.msra.mxu0 0.0
    %98 = vmatprep.subr.mxu0 0.0
    %99 = vmatpush2.msra.mxu0 0.0
    %100 = vmatprep.subr.mxu0 0.0
    %101 = vmatpush2.msra.mxu0 0.0
    %102 = vmatprep.subr.mxu0 0.0
    %103 = vmatpush2.msra.mxu0 0.0
    %104 = vmatprep.subr.mxu0 0.0
    %105 = vmatpush2.msra.mxu0 0.0
    %106 = vmatprep.mubr.f32.mxu0 0.0
    %107 = vmatmul.mubr.f32.gmra.mxu0 %v36
    %v108 = vpop.f32.mrf.mxu0
    %v109 = vadd.f32 0.0, %v108
    %v110 = vpop.f32.mrf.mxu0
    %111 = vdwg.mxu0
    %v112 = vld [vmem:[%s2] sm:$0x1]
    %v113 = vld [vmem:[%s2 + $0x1] sm:$0x1]
    %v114 = vld [vmem:[%s2 + $0x2] sm:$0x1]
    %v115 = vld [vmem:[%s2 + $0x3] sm:$0x1]
    %v116 = vld [vmem:[%s2 + $0x4] sm:$0x1]
    %v117 = vld [vmem:[%s2 + $0x5] sm:$0x1]
    %v118 = vlaneseq
    %v119 = vshrl.u32 %v118, 7
    %v120 = vsub.s32 0, %v119
    %v121 = vrot.slane %v112, %v120
    %v122 = vsub.f32 %v109, %v121
    %v123 = vlaneseq
    %v124 = vshrl.u32 %v123, 7
    %v125 = vsub.s32 0, %v124
    %v126 = vrot.slane %v113, %v125
    %v127 = vmul.f32 %v122, %v126
    %v128 = vlaneseq
    %v129 = vshrl.u32 %v128, 7
    %v130 = vsub.s32 0, %v129
    %v131 = vrot.slane %v114, %v130
    %v132 = vadd.f32 %v127, %v131
    %v133 = vmax.f32 %v132, 0.0
    %v134 = vmin.f32 %v133, 1.0
    %v135 = vlaneseq
    %v136 = vshrl.u32 %v135, 7
    %v137 = vsub.s32 0, %v136
    %v138 = vrot.slane %v115, %v137
    %v139 = vsub.f32 %v109, %v138
    %v140 = vlaneseq
    %v141 = vshrl.u32 %v140, 7
    %v142 = vsub.s32 0, %v141
    %v143 = vrot.slane %v116, %v142
    %v144 = vmul.f32 %v139, %v143
    %v145 = vmax.f32 %v144, 0.0
    %v146 = vmin.f32 %v145, 1.0
    %v147 = vsub.f32 %v134, %v146
    %v148 = vsub.f32 %v109, 128.0
    %v149 = vmul.f32 %v148, -0.0078125
    %vm150 = vcmp.lt.f32.partialorder %v109, 0.0
    %v151 = vmul.f32 %v131, %v149
    %v152 = vsub.f32 1.0, %v149
    %v153 = vlaneseq
    %v154 = vshrl.u32 %v153, 7
    %v155 = vsub.s32 0, %v154
    %v156 = vrot.slane %v117, %v155
    %v157 = vmul.f32 %v156, %v152
    %v158 = vadd.f32 %v151, %v157
    %v159 = vsel %vm150, %v158, %v147
    %v160 = vld [vmem:[#allocation2] sm:$0xff]
    %v161 = vld [vmem:[#allocation2 + $0x8] sm:$0xff]
    %v162 = vld [vmem:[#allocation2 + $0x10] sm:$0xf]
    %vm163 = vcmask 162816
    %v165 = vsel %vm163, %v159, 0
    %vm167 = vcmask 1043456
    %v169 = vsel %vm167, %v162, 0
    %171 = vmatprep.subr.mxu0 0.0
    %172 = vmatpush1.msra.mxu0 0.0
    %173 = vmatprep.subr.mxu0 0.0
    %174 = vmatpush1.msra.mxu0 0.0
    %175 = vmatprep.subr.mxu0 0.0
    %176 = vmatpush1.msra.mxu0 0.0
    %177 = vmatprep.subr.mxu0 0.0
    %178 = vmatpush1.msra.mxu0 0.0
    %179 = vmatprep.subr.mxu0 0.0
    %180 = vmatpush1.msra.mxu0 0.0
    %181 = vmatprep.subr.mxu0 0.0
    %182 = vmatpush1.msra.mxu0 0.0
    %183 = vmatprep.subr.mxu0 0.0
    %184 = vmatpush1.msra.mxu0 0.0
    %185 = vmatprep.subr.mxu0 0.0
    %186 = vmatpush1.msra.mxu0 0.0
    %187 = vmatprep.subr.mxu0 0.0
    %188 = vmatpush1.msra.mxu0 0.0
    %189 = vmatprep.subr.mxu0 0.0
    %190 = vmatpush1.msra.mxu0 0.0
    %191 = vmatprep.subr.mxu0 0.0
    %192 = vmatpush1.msra.mxu0 0.0
    %193 = vmatprep.subr.mxu0 0.0
    %194 = vmatpush1.msra.mxu0 0.0
    %195 = vmatprep.subr.mxu0 0.0
    %196 = vmatpush1.msra.mxu0 0.0
    %197 = vmatprep.subr.mxu0 0.0
    %198 = vmatpush1.msra.mxu0 %v169
    %199 = vmatprep.subr.mxu0 0.0
    %200 = vmatpush1.msra.mxu0 %v161
    %201 = vmatprep.subr.mxu0 0.0
    %202 = vmatpush1.msra.mxu0 %v160
    %203 = vmatprep.subr.mxu0 0.0
    %204 = vmatpush2.msra.mxu0 0.0
    %205 = vmatprep.subr.mxu0 0.0
    %206 = vmatpush2.msra.mxu0 0.0
    %207 = vmatprep.subr.mxu0 0.0
    %208 = vmatpush2.msra.mxu0 0.0
    %209 = vmatprep.subr.mxu0 0.0
    %210 = vmatpush2.msra.mxu0 0.0
    %211 = vmatprep.subr.mxu0 0.0
    %212 = vmatpush2.msra.mxu0 0.0
    %213 = vmatprep.subr.mxu0 0.0
    %214 = vmatpush2.msra.mxu0 0.0
    %215 = vmatprep.subr.mxu0 0.0
    %216 = vmatpush2.msra.mxu0 0.0
    %217 = vmatprep.subr.mxu0 0.0
    %218 = vmatpush2.msra.mxu0 0.0
    %219 = vmatprep.subr.mxu0 0.0
    %220 = vmatpush2.msra.mxu0 0.0
    %221 = vmatprep.subr.mxu0 0.0
    %222 = vmatpush2.msra.mxu0 0.0
    %223 = vmatprep.subr.mxu0 0.0
    %224 = vmatpush2.msra.mxu0 0.0
    %225 = vmatprep.subr.mxu0 0.0
    %226 = vmatpush2.msra.mxu0 0.0
    %227 = vmatprep.subr.mxu0 0.0
    %228 = vmatpush2.msra.mxu0 0.0
    %229 = vmatprep.subr.mxu0 0.0
    %230 = vmatpush2.msra.mxu0 0.0
    %231 = vmatprep.subr.mxu0 0.0
    %232 = vmatpush2.msra.mxu0 0.0
    %233 = vmatprep.subr.mxu0 0.0
    %234 = vmatpush2.msra.mxu0 0.0
    %235 = vmatprep.mubr.f32.mxu0 0.0
    %236 = vmatmul.mubr.f32.gmra.mxu0 %v165
    %v237 = vpop.f32.mrf.mxu0
    %v238 = vadd.f32 0.0, %v237
    %v239 = vpop.f32.mrf.mxu0
    %240 = vdwg.mxu0
    %vm241 = vcmask 523264
    %242 = vst.msk [vmem:[#allocation5] sm:$0xff] %vm241, %v238
    // Predicated region
    $region22: #{tpu_custom_call.1} parent=1 // pred_check
      _
    $region23: #{tpu_custom_call.1} parent=1 // pred_check_branch
      %244 = sbr.rel (0) target = $region25
    $region24: #{tpu_custom_call.1} parent=1 // pred_region
      %s246 = ssub.s32 128, 128
      %247 = vsyncadd [#allocation4], %s246
      %s249 = sshll.u32 [#allocation5], 4
      %s250 = int_to_ptr.vmem [resolvable:$true] %s249
      %252 = dma.vmem_to_hbm [thread:$0]  %s250, 128, %s4, [#allocation4]
    $region25: #{tpu_custom_call.1} parent=1 // pred_fallthru
      _
    // Predicated region
    $region26: #{tpu_custom_call.1} parent=1 // pred_check
      _
    $region27: #{tpu_custom_call.1} parent=1 // pred_check_branch
      %254 = sbr.rel (0) target = $region29
    $region28: #{tpu_custom_call.1} parent=1 // pred_region
      %255 = dma.done [#allocation4], 128
    $region29: #{tpu_custom_call.1} parent=1 // pred_fallthru
      _
    %256 = vsyncpa [#allocation3], 1
    %257 = vsyncpa [#allocation4], 1

</llo_original>
